<compile_context>
chip_gen: v5e
topology: v5e:2x2
jax: 0.10.0
libtpu: 0.0.40
codegen_flags: <defaults>
</compile_context>

<pallas_src>
import numpy as np

import jax
import jax.numpy as jnp
from jax.experimental import pallas as pl
from jax.experimental.pallas import tpu as pltpu

# Same deterministic parameters as the PyTorch module __init__:
#   k = [0.05, 0.25, 0.4, 0.25, 0.05]; kernel = outer(k, k) per channel.
K1 = (0.05, 0.25, 0.4, 0.25, 0.05)
EPS = 1e-3  # CharbonnierLoss eps
MAX_PLANES_PER_BLOCK = 8  # bounds the static in-kernel unroll


# ----------------------------------------------------------------------------
# Trace-time construction of the Laplacian operator matrices
# ----------------------------------------------------------------------------
def _conv_matrix(n):
    """A[i, j] = sum_t K1[t] where clamp(i + t - 2, 0, n-1) == j  (replicate pad)."""
    a = np.zeros((n, n), np.float64)
    for i in range(n):
        for t, kt in enumerate(K1):
            j = min(max(i + t - 2, 0), n - 1)
            a[i, j] += kt
    return a


def _laplacian_operators(h, w, g):
    """lap(p) = p - Mv @ p @ Mh, with the even-index *4 mask and replicate
    padding folded into the banded matrices.  Mh is block-diagonal over the G
    planes packed along the lane axis."""
    av = _conv_matrix(h)                       # row (vertical) operator
    aht = _conv_matrix(w).T                    # column (horizontal) operator, right-multiply form
    mr = np.where(np.arange(h) % 2 == 0, 2.0, 0.0)
    mc = np.where(np.arange(w) % 2 == 0, 2.0, 0.0)
    mv = av @ (mr[:, None] * av)               # Av @ diag(2*even_row) @ Av
    mh = aht @ (mc[:, None] * aht)             # Ah^T @ diag(2*even_col) @ Ah^T
    if g > 1:
        mh = np.kron(np.eye(g), mh)            # block-diagonal: no cross-plane mixing
    return jnp.asarray(mv, jnp.float32), jnp.asarray(mh, jnp.float32)


# ----------------------------------------------------------------------------
# Fused Pallas kernel: Charbonnier( lap(x) - lap(y) ) partial sums per block
# ----------------------------------------------------------------------------
def _edge_loss_kernel(mv_ref, mh_ref, x_ref, y_ref, out_ref):
    P, H, Wg = x_ref.shape
    mv = mv_ref[...]
    mh = mh_ref[...]
    eps2 = jnp.float32(EPS * EPS)

    acc = jnp.zeros((1, Wg), jnp.float32)      # lane-resident partial sum
    for p in range(P):                         # static unroll, P <= MAX_PLANES_PER_BLOCK
        # Cast in-kernel: inputs are DMA'd in their native dtype.
        d = x_ref[p].astype(jnp.float32) - y_ref[p].astype(jnp.float32)
        # lap(x) - lap(y) == lap(x - y): one operator application per plane.
        t = jnp.dot(mv, d, preferred_element_type=jnp.float32)   # (H, Wg)  MXU
        u = jnp.dot(t, mh, preferred_element_type=jnp.float32)   # (H, Wg)  MXU
        dl = d - u
        r = jnp.sqrt(dl * dl + eps2)
        acc = acc + jnp.sum(r, axis=0, keepdims=True)            # sublane reduce only

    out_ref[...] = acc.reshape(1, 1, Wg)


# ----------------------------------------------------------------------------
# Wrapper
# ----------------------------------------------------------------------------
def _vmem_limit_bytes():
    try:
        cap = int(pltpu.get_tpu_info().vmem_capacity_bytes)
    except Exception:
        cap = 64 * 1024 * 1024                 # conservative (v7x physical)
    # ~45 MiB on v7x (64 MiB physical), ~90 MiB on v5e/v6e (128 MiB physical).
    return max(16 * 1024 * 1024, min(96 * 1024 * 1024, cap * 7 // 10))


def _pick_groups_per_block(n_groups, h, wg, in_itemsize, budget):
    """Largest divisor of n_groups whose working set fits the VMEM budget."""
    op_bytes = 2 * 4 * (h * h + wg * wg)       # Mv/Mh, f32, double-buffered
    tmp_bytes = 8 * h * wg * 4                 # per-plane f32 intermediates (d,t,u,dl,r,...)
    best = 0
    for p in range(1, min(n_groups, MAX_PLANES_PER_BLOCK) + 1):
        if n_groups % p:
            continue
        io_bytes = 2 * 2 * p * h * wg * in_itemsize  # x,y blocks, double-buffered
        if op_bytes + tmp_bytes + io_bytes <= budget:
            best = p
    return best


@jax.jit
def edge_loss(x, y):
    """EdgeLoss.forward: CharbonnierLoss(laplacian(x), laplacian(y)), NCHW."""
    B, C, H, W = x.shape
    bc = B * C
    xf = x.reshape(bc, H, W)                   # native dtype; cast happens in-kernel
    yf = y.reshape(bc, H, W)

    # Fold narrow planes into the lane axis (vreg lanes = 128).
    G = 1
    if W < 128:
        for g in range(1, bc + 1):
            if bc % g == 0 and g * W <= 256:
                G = g
    Wg = G * W
    n_groups = bc // G
    if G > 1:
        xf = xf.reshape(n_groups, G, H, W).transpose(0, 2, 1, 3).reshape(n_groups, H, Wg)
        yf = yf.reshape(n_groups, G, H, W).transpose(0, 2, 1, 3).reshape(n_groups, H, Wg)

    vmem_limit = _vmem_limit_bytes()
    itemsize = jnp.dtype(x.dtype).itemsize
    P = _pick_groups_per_block(n_groups, H, Wg, itemsize, int(vmem_limit * 0.6))
    if P == 0:
        # TODO(synk): H-slab grid axis with 4-row replicate halo + banded operator
        # tiles for planes too large to stage whole in VMEM; plain-XLA fallback for now.
        return _ref_edge_loss(x.astype(jnp.float32), y.astype(jnp.float32))

    mv, mh = _laplacian_operators(H, W, G)
    n_blocks = n_groups // P

    partials = pl.pallas_call(
        _edge_loss_kernel,
        out_shape=jax.ShapeDtypeStruct((n_blocks, 1, Wg), jnp.float32),
        grid=(n_blocks,),
        in_specs=[
            pl.BlockSpec((H, H), lambda i: (0, 0)),        # Mv, VMEM-resident
            pl.BlockSpec((Wg, Wg), lambda i: (0, 0)),      # Mh (block-diag), VMEM-resident
            pl.BlockSpec((P, H, Wg), lambda i: (i, 0, 0)),  # x block
            pl.BlockSpec((P, H, Wg), lambda i: (i, 0, 0)),  # y block
        ],
        out_specs=pl.BlockSpec((1, 1, Wg), lambda i: (i, 0, 0)),
        compiler_params=pltpu.CompilerParams(
            dimension_semantics=("parallel",),             # independent blocks -> megacore
            vmem_limit_bytes=vmem_limit),
    )(mv, mh, xf, yf)

    return jnp.sum(partials) / jnp.float32(bc * H * W)


# ----------------------------------------------------------------------------
# Pure-JAX reference (mirrors the PyTorch code): correctness check + fallback.
# ----------------------------------------------------------------------------
def _ref_conv_gauss(img):
    pad = 2
    imgp = jnp.pad(img, ((0, 0), (0, 0), (pad, pad), (pad, pad)), mode="edge")
    H, W = img.shape[2], img.shape[3]
    out = jnp.zeros_like(img)
    for i in range(5):
        for j in range(5):
            out = out + K1[i] * K1[j] * imgp[:, :, i:i + H, j:j + W]
    return out


def _ref_laplacian(cur):
    f = _ref_conv_gauss(cur)
    H, W = f.shape[2], f.shape[3]
    mh = (jnp.arange(H) % 2 == 0)
    mw = (jnp.arange(W) % 2 == 0)
    mask = (mh[:, None] & mw[None, :]).astype(f.dtype)[None, None]
    nf = f * mask * 4.0
    return cur - _ref_conv_gauss(nf)


def _ref_edge_loss(x, y):
    d = _ref_laplacian(x) - _ref_laplacian(y)
    return jnp.mean(jnp.sqrt(d * d + EPS * EPS))


# ----------------------------------------------------------------------------
if __name__ == "__main__":
    key = jax.random.PRNGKey(0)
    # EdgeLoss hardcodes 3 channels (kernel repeated 3x).
    shapes = [
        (2, 3, 16, 16),    # narrow-W: 6 planes folded into lanes (G=6, Wg=96)
        (2, 3, 16, 128),   # lane-wide, single block, P>1 static unroll
        (6, 3, 16, 160),   # multi-block parallel grid (3 blocks)
    ]
    for shape in shapes:
        key, kx, ky = jax.random.split(key, 3)
        x = jax.random.uniform(kx, shape, dtype=jnp.float32)
        y = jax.random.uniform(ky, shape, dtype=jnp.float32)
        loss = edge_loss(x, y)
        jax.block_until_ready(loss)
        ref = _ref_edge_loss(x, y)
        assert abs(float(loss) - float(ref)) < 1e-4 + 1e-3 * abs(float(ref)), (
            shape, float(loss), float(ref))
    print("KERNEL_OK")
</pallas_src>

<mosaic_0001>
module attributes {stable_mosaic.version = 11 : i64} {
  func.func @_edge_loss_kernel(%arg0: i32, %arg1: memref<16x16xf32, #tpu.memory_space<vmem>>, %arg2: memref<96x96xf32, #tpu.memory_space<vmem>>, %arg3: memref<1x16x96xf32, #tpu.memory_space<vmem>>, %arg4: memref<1x16x96xf32, #tpu.memory_space<vmem>>, %arg5: memref<1x1x96xf32, #tpu.memory_space<vmem>>) attributes {dimension_semantics = [#tpu.dimension_semantics<parallel>], iteration_bounds = array<i64: 1>, scalar_prefetch = 0 : i64, scratch_operands = 0 : i64, tpu.core_type = #tpu.core_type<tc>, window_params = [{pipeline_mode = #tpu.pipeline_mode<synchronous>, transform_indices = @transform_0, window_bounds = array<i64: 16, 16>}, {pipeline_mode = #tpu.pipeline_mode<synchronous>, transform_indices = @transform_1, window_bounds = array<i64: 96, 96>}, {transform_indices = @transform_2, window_bounds = array<i64: 1, 16, 96>}, {transform_indices = @transform_3, window_bounds = array<i64: 1, 16, 96>}, {transform_indices = @transform_4, window_bounds = array<i64: 1, 1, 96>}]} {
    %c0 = arith.constant 0 : index
    %c0_0 = arith.constant 0 : index
    %0 = vector.load %arg1[%c0, %c0_0] : memref<16x16xf32, #tpu.memory_space<vmem>>, vector<16x16xf32>
    %c0_1 = arith.constant 0 : index
    %c0_2 = arith.constant 0 : index
    %1 = vector.load %arg2[%c0_1, %c0_2] : memref<96x96xf32, #tpu.memory_space<vmem>>, vector<96x96xf32>
    %cst = arith.constant 0.000000e+00 : f32
    %2 = vector.broadcast %cst : f32 to vector<1x96xf32>
    %c0_3 = arith.constant 0 : index
    %c0_4 = arith.constant 0 : index
    %c0_5 = arith.constant 0 : index
    %3 = vector.load %arg3[%c0_3, %c0_4, %c0_5] : memref<1x16x96xf32, #tpu.memory_space<vmem>>, vector<1x16x96xf32>
    %4 = vector.shape_cast %3 : vector<1x16x96xf32> to vector<16x96xf32>
    %c0_6 = arith.constant 0 : index
    %c0_7 = arith.constant 0 : index
    %c0_8 = arith.constant 0 : index
    %5 = vector.load %arg4[%c0_6, %c0_7, %c0_8] : memref<1x16x96xf32, #tpu.memory_space<vmem>>, vector<1x16x96xf32>
    %6 = vector.shape_cast %5 : vector<1x16x96xf32> to vector<16x96xf32>
    %7 = arith.subf %4, %6 : vector<16x96xf32>
    %cst_9 = arith.constant dense<0.000000e+00> : vector<16x96xf32>
    %8 = tpu.matmul %0, %7, %cst_9 {dimension_numbers = #tpu.dot_dimension_numbers<[1], [0], [0], [1], [0, 0, 1, 1], [], []>} : vector<16x16xf32>, vector<16x96xf32>, vector<16x96xf32> -> vector<16x96xf32>
    %cst_10 = arith.constant dense<0.000000e+00> : vector<16x96xf32>
    %9 = tpu.matmul %8, %1, %cst_10 {dimension_numbers = #tpu.dot_dimension_numbers<[1], [0], [0], [1], [0, 0, 1, 1], [], []>} : vector<16x96xf32>, vector<96x96xf32>, vector<16x96xf32> -> vector<16x96xf32>
    %10 = arith.subf %7, %9 : vector<16x96xf32>
    %11 = arith.mulf %10, %10 : vector<16x96xf32>
    %cst_11 = arith.constant 9.99999997E-7 : f32
    %12 = vector.broadcast %cst_11 : f32 to vector<16x96xf32>
    %13 = arith.addf %11, %12 : vector<16x96xf32>
    %14 = math.sqrt %13 : vector<16x96xf32>
    %cst_12 = arith.constant dense<0.000000e+00> : vector<96xf32>
    %15 = vector.multi_reduction <add>, %14, %cst_12 [0] : vector<16x96xf32> to vector<96xf32>
    %16 = vector.shape_cast %15 : vector<96xf32> to vector<1x96xf32>
    %17 = arith.addf %2, %16 : vector<1x96xf32>
    %18 = vector.shape_cast %17 : vector<1x96xf32> to vector<1x1x96xf32>
    %c0_13 = arith.constant 0 : index
    %c0_14 = arith.constant 0 : index
    %c0_15 = arith.constant 0 : index
    %19 = vector.load %arg5[%c0_13, %c0_14, %c0_15] : memref<1x1x96xf32, #tpu.memory_space<vmem>>, vector<1x1x96xf32>
    tpu.vector_store %arg5[%c0_13, %c0_14, %c0_15], %18 {strides = array<i32>} : memref<1x1x96xf32, #tpu.memory_space<vmem>>, vector<1x1x96xf32>,
    return
  }
  func.func @transform_0(%arg0: i32) -> (i32, i32) {
    %c0_i32 = arith.constant 0 : i32
    %c0_i32_0 = arith.constant 0 : i32
    %c0_i32_1 = arith.constant 0 : i32
    return %c0_i32, %c0_i32_0 : i32, i32
  }
  func.func @transform_1(%arg0: i32) -> (i32, i32) {
    %c0_i32 = arith.constant 0 : i32
    %c0_i32_0 = arith.constant 0 : i32
    %c0_i32_1 = arith.constant 0 : i32
    return %c0_i32, %c0_i32_0 : i32, i32
  }
  func.func @transform_2(%arg0: i32) -> (i32, i32, i32) {
    %c0_i32 = arith.constant 0 : i32
    %c0_i32_0 = arith.constant 0 : i32
    %c0_i32_1 = arith.constant 0 : i32
    return %arg0, %c0_i32, %c0_i32_0 : i32, i32, i32
  }
  func.func @transform_3(%arg0: i32) -> (i32, i32, i32) {
    %c0_i32 = arith.constant 0 : i32
    %c0_i32_0 = arith.constant 0 : i32
    %c0_i32_1 = arith.constant 0 : i32
    return %arg0, %c0_i32, %c0_i32_0 : i32, i32, i32
  }
  func.func @transform_4(%arg0: i32) -> (i32, i32, i32) {
    %c0_i32 = arith.constant 0 : i32
    %c0_i32_0 = arith.constant 0 : i32
    %c0_i32_1 = arith.constant 0 : i32
    return %arg0, %c0_i32, %c0_i32_0 : i32, i32, i32
  }
}

</mosaic_0001>

<llo_original>
// kernel: edge_loss.1
$region0: #{edge_loss.1}
  #allocation0 [shape = 'u32[]', space=smem, size = 0x4, offset = 0x4, fixed_abs, tag = 'smem constant byte address 0x4 - core index']
  #allocation1 [shape = 'u32[72,128]{1,0:T(1,128)}', space=vmem, size = 0x9000, scoped, tag = 'internal scratch']
  %s0 = inlined_call_operand.vmem [shape: f32[16,16], index: 0, kind: input, shape index: {}]
  %s1 = inlined_call_operand.vmem [shape: f32[96,96], index: 1, kind: input, shape index: {}]
  %s2 = inlined_call_operand.vmem [shape: f32[1,16,96], index: 2, kind: input, shape index: {}]
  %s3 = inlined_call_operand.vmem [shape: f32[1,16,96], index: 3, kind: input, shape index: {}]
  %s4 = inlined_call_operand.vmem [shape: f32[1,1,96], index: 4, kind: output, shape index: {}]
  %s5 = sld [smem:[#allocation0]]
  $region26: #{edge_loss.1} parent=0
    _
  %s7 = ssub.s32 1, %s5
  %s8 = scalar_select 0, %s7, %s5
  // Predicated region
  $region2: #{edge_loss.1} parent=0 // pred_check
    _
  $region3: #{edge_loss.1} parent=0 // pred_check_branch
    %10 = sbr.rel (0) target = $region5
  $region4: #{edge_loss.1} parent=0 // pred_region
    _
  $region5: #{edge_loss.1} parent=0 // pred_fallthru
    _
  // Predicated region
  $region6: #{edge_loss.1} parent=0 // pred_check
    _
  $region7: #{edge_loss.1} parent=0 // pred_check_branch
    %12 = sbr.rel (0) target = $region9
  $region8: #{edge_loss.1} parent=0 // pred_region
    _
  $region9: #{edge_loss.1} parent=0 // pred_fallthru
    _
  // Predicated region
  $region10: #{edge_loss.1} parent=0 // pred_check
    _
  $region11: #{edge_loss.1} parent=0 // pred_check_branch
    %14 = sbr.rel (0) target = $region13
  $region12: #{edge_loss.1} parent=0 // pred_region
    _
  $region13: #{edge_loss.1} parent=0 // pred_fallthru
    _
  // Predicated region
  $region14: #{edge_loss.1} parent=0 // pred_check
    _
  $region15: #{edge_loss.1} parent=0 // pred_check_branch
    %16 = sbr.rel (0) target = $region17
  $region16: #{edge_loss.1} parent=0 // pred_region
    _
  $region17: #{edge_loss.1} parent=0 // pred_fallthru
    _
  %v17 = vld [vmem:[%s0] sm:$0xff]
  %v18 = vld [vmem:[%s0 + $0x8] sm:$0xff]
  %v19 = vld [vmem:[%s1] sm:$0xff]
  %v20 = vld [vmem:[%s1 + $0x8] sm:$0xff]
  %v21 = vld [vmem:[%s1 + $0x10] sm:$0xff]
  %v22 = vld [vmem:[%s1 + $0x18] sm:$0xff]
  %v23 = vld [vmem:[%s1 + $0x20] sm:$0xff]
  %v24 = vld [vmem:[%s1 + $0x28] sm:$0xff]
  %v25 = vld [vmem:[%s1 + $0x30] sm:$0xff]
  %v26 = vld [vmem:[%s1 + $0x38] sm:$0xff]
  %v27 = vld [vmem:[%s1 + $0x40] sm:$0xff]
  %v28 = vld [vmem:[%s1 + $0x48] sm:$0xff]
  %v29 = vld [vmem:[%s1 + $0x50] sm:$0xff]
  %v30 = vld [vmem:[%s1 + $0x58] sm:$0xff]
  %v31 = vld [vmem:[%s2] sm:$0xff]
  %v32 = vld [vmem:[%s2 + $0x8] sm:$0xff]
  %v33 = vld [vmem:[%s3] sm:$0xff]
  %v34 = vld [vmem:[%s3 + $0x8] sm:$0xff]
  %v35 = vsub.f32 %v31, %v33
  %v36 = vsub.f32 %v32, %v34
  %vm37 = vcmask 130048
  %v39 = vsel %vm37, %v17, 0
  %v42 = vsel %vm37, %v18, 0
  %44 = vmatpush.msra.mxu0 0.0
  %45 = vmatpush.msra.mxu0 0.0
  %46 = vmatpush.msra.mxu0 0.0
  %47 = vmatpush.msra.mxu0 0.0
  %48 = vmatpush.msra.mxu0 0.0
  %49 = vmatpush.msra.mxu0 0.0
  %50 = vmatpush.msra.mxu0 0.0
  %51 = vmatpush.msra.mxu0 0.0
  %52 = vmatpush.msra.mxu0 0.0
  %53 = vmatpush.msra.mxu0 0.0
  %54 = vmatpush.msra.mxu0 0.0
  %55 = vmatpush.msra.mxu0 0.0
  %56 = vmatpush.msra.mxu0 0.0
  %57 = vmatpush.msra.mxu0 0.0
  %58 = vmatpush.msra.mxu0 %v36
  %59 = vmatpush.msra.mxu0 %v35
  %60 = vmatmul.f32.gmra.mxu0 %v39
  %v61 = vpop.f32.mrf.mxu0
  %v62 = vadd.f32 0.0, %v61
  %63 = vmatmul.f32.gmra.mxu0 %v42
  %v64 = vpop.f32.mrf.mxu0
  %v65 = vadd.f32 0.0, %v64
  %66 = vdwg.mxu0
  %vm67 = vcmask 785408
  %v69 = vsel %vm67, %v62, 0
  %v72 = vsel %vm67, %v65, 0
  %74 = vmatpush.msra.mxu0 0.0
  %75 = vmatpush.msra.mxu0 0.0
  %76 = vmatpush.msra.mxu0 0.0
  %77 = vmatpush.msra.mxu0 0.0
  %78 = vmatpush.msra.mxu0 %v30
  %79 = vmatpush.msra.mxu0 %v29
  %80 = vmatpush.msra.mxu0 %v28
  %81 = vmatpush.msra.mxu0 %v27
  %82 = vmatpush.msra.mxu0 %v26
  %83 = vmatpush.msra.mxu0 %v25
  %84 = vmatpush.msra.mxu0 %v24
  %85 = vmatpush.msra.mxu0 %v23
  %86 = vmatpush.msra.mxu0 %v22
  %87 = vmatpush.msra.mxu0 %v21
  %88 = vmatpush.msra.mxu0 %v20
  %89 = vmatpush.msra.mxu0 %v19
  %90 = vmatmul.f32.gmra.mxu0 %v69
  %v91 = vpop.f32.mrf.mxu0
  %v92 = vadd.f32 0.0, %v91
  %93 = vmatmul.f32.gmra.mxu0 %v72
  %v94 = vpop.f32.mrf.mxu0
  %v95 = vadd.f32 0.0, %v94
  %96 = vdwg.mxu0
  %v97 = vsub.f32 %v35, %v92
  %v98 = vsub.f32 %v36, %v95
  %v99 = vmul.f32 %v97, %v97
  %v100 = vmul.f32 %v98, %v98
  %v101 = vadd.f32 %v99, 1e-06
  %v102 = vadd.f32 %v100, 1e-06
  %v103 = vrsqrt.pop %v101
  %v104 = vmul.f32 %v103, %v101
  %v105 = vmul.f32 %v104, %v103
  %v106 = vmul.f32 0.5, %v105
  %v107 = vsub.f32 1.5, %v106
  %v108 = vmul.f32 %v103, %v107
  %v109 = vmul.f32 %v101, %v108
  %vm110 = vcmp.eq.f32.partialorder %v101, inf
  %v111 = vsel %vm110, %v101, %v109
  %vm112 = vcmp.eq.f32.partialorder %v101, 0.0
  %v113 = vand.u32 %v101, 2147483648
  %v114 = vsel %vm112, %v113, %v111
  %v115 = vrsqrt.pop %v102
  %v116 = vmul.f32 %v115, %v102
  %v117 = vmul.f32 %v116, %v115
  %v118 = vmul.f32 0.5, %v117
  %v119 = vsub.f32 1.5, %v118
  %v120 = vmul.f32 %v115, %v119
  %v121 = vmul.f32 %v102, %v120
  %vm122 = vcmp.eq.f32.partialorder %v102, inf
  %v123 = vsel %vm122, %v102, %v121
  %vm124 = vcmp.eq.f32.partialorder %v102, 0.0
  %v125 = vand.u32 %v102, 2147483648
  %v126 = vsel %vm124, %v125, %v123
  %v127 = vsel %vm67, %v114, 0.0
  %v128 = vsel %vm67, %v126, 0.0
  %v129 = vadd.f32 %v127, %v128
  %v130 = vrot.slane %v129, 4
  %v131 = vadd.f32 %v129, %v130
  %v132 = vrot.slane %v131, 2
  %v133 = vadd.f32 %v131, %v132
  %v134 = vrot.slane %v133, 1
  %v135 = vadd.f32 %v133, %v134
  %v136 = vadd.f32 %v135, 0.0
  %vm137 = vcmask 778240
  %138 = vst.msk [vmem:[%s4] sm:$0x1] %vm137, %v136
  // Predicated region
  $region18: #{edge_loss.1} parent=0 // pred_check
    _
  $region19: #{edge_loss.1} parent=0 // pred_check_branch
    %140 = sbr.rel (0) target = $region21
  $region20: #{edge_loss.1} parent=0 // pred_region
    _
  $region21: #{edge_loss.1} parent=0 // pred_fallthru
    _
  // Predicated region
  $region22: #{edge_loss.1} parent=0 // pred_check
    _
  $region23: #{edge_loss.1} parent=0 // pred_check_branch
    %142 = sbr.rel (0) target = $region25
  $region24: #{edge_loss.1} parent=0 // pred_region
    _
  $region25: #{edge_loss.1} parent=0 // pred_fallthru
    _

</llo_original>
